<compile_context>
chip_gen: v6e
topology: v6e:2x2x1
jax: 0.10.0
libtpu: 0.0.40
codegen_flags: <defaults>
</compile_context>

<pallas_src>
import functools

import jax
import jax.numpy as jnp
import numpy as np
from jax.experimental import pallas as pl
from jax.experimental.pallas import tpu as pltpu

ACTIONS = ("jump", "ss", "choreographic_ss", "spin")
ACTION_TO_ID = {a: i for i, a in enumerate(ACTIONS)}

EPS = 1e-8            # matches torch.cosine_similarity's norm clamp
ROW_PAD_CODE = -1.0   # sentinel for padded / masked-out bank rows
ELEM_PAD_CODE = -4.0  # sentinel for padded / element_idx == -1 elements
                      # (chosen so neither code nor code^1 collides with -1)


def _pretraining_loss_kernel(margin, enforce_dissimilarity,
                             x_ref, meta_ref, bank_ref, row_code_ref,
                             sim_ref, dis_ref):
    """One grid step = one lane-dense block of `block_n` labeled elements.

    x_ref:        (D, TN)     gathered query embeddings, elements lane-dense
    meta_ref:     (8, TN)     f32 rows: [1/||x||, w_sim, w_dis, code_sim, code_dis, 0,0,0]
    bank_ref:     (R_pad, D)  rubric rows pre-scaled by row_mask / max(||row||, eps)
    row_code_ref: (R_pad, 1)  f32 action*2+polarity per bank row (-1 for pad/masked)
    sim_ref:      (1, TN)     per-element similarity-loss contribution (f32)
    dis_ref:      (1, TN)     per-element dissimilarity-loss contribution (f32)
    """
    # All-pairs dots on the MXU: (R_pad, D) @ (D, TN) -> (R_pad, TN).  The
    # element axis is the MXU output lane dim, the small rubric-row axis is on
    # sublanes, so everything downstream reduces along sublanes (cheap).
    dots = jnp.dot(bank_ref[...], x_ref[...], preferred_element_type=jnp.float32)

    meta = meta_ref[...]                               # (8, TN) f32
    x_rnorm = meta[0:1, :]                             # 1 / max(||x||, eps)
    w_sim = meta[1:2, :]                               # valid / den_sim
    code_sim = meta[3:4, :]                            # wanted (action, polarity) code

    # Bank rows already carry row_mask / row_norm, so one broadcast multiply
    # finishes the cosine (0 for invalid / padded rows).
    cos = dots * x_rnorm                               # (R_pad, TN) f32

    row_code = row_code_ref[...]                       # (R_pad, 1) f32
    sel_sim = (row_code == code_sim).astype(jnp.float32)          # (R_pad, TN)
    # Sublane reduction over the (tiny) rubric-row axis; the denominator is a
    # precomputed per-element reciprocal -> multiply only, no divide.
    sim_ref[...] = jnp.sum(sel_sim * (1.0 - cos), axis=0, keepdims=True) * w_sim

    if enforce_dissimilarity:
        w_dis = meta[2:3, :]
        code_dis = meta[4:5, :]
        sel_dis = (row_code == code_dis).astype(jnp.float32)
        hinge = jnp.maximum(cos - margin, 0.0)
        dis_ref[...] = jnp.sum(sel_dis * hinge, axis=0, keepdims=True) * w_dis
    else:
        dis_ref[...] = jnp.zeros_like(dis_ref)


def _vmem_limit_bytes():
    cap = 64 * 1024 * 1024
    try:
        cap = int(pltpu.get_tpu_info().vmem_capacity_bytes)
    except Exception:
        pass  # query unavailable -> conservative 48 MiB limit below
    # ~3/4 of physical: 48 MiB on v7x (64 MiB part), 96 MiB on v5e/v6e (128 MiB).
    return max(32 * 1024 * 1024, min((cap * 3) // 4, 96 * 1024 * 1024))


def _pick_block_n(N, D, R_pad, compute_dtype, requested):
    if requested is not None:
        return max(128, (int(requested) // 128) * 128)
    itemsize = jnp.dtype(compute_dtype).itemsize
    budget = 24 * 1024 * 1024                 # working-set target, safe on every chip
    bytes_per_col = (2 * D * itemsize         # x^T block, double-buffered
                     + 2 * 8 * 4              # meta block, double-buffered
                     + 2 * 2 * 4              # two f32 output rows, double-buffered
                     + 6 * R_pad * 4)         # dots/cos/sel/hinge temporaries
    bn = budget // max(bytes_per_col, 1)
    bn = max(128, min(2048, (bn // 128) * 128))
    # Don't pad tiny problems up to a huge block.
    bn = min(bn, max(128, ((N + 127) // 128) * 128))
    # v7x has two TensorCores; with a "parallel" element grid prefer >=2
    # balanced steps whenever N allows so neither core idles.
    if bn >= N and N > 128:
        bn = max(128, ((-(-N // 2) + 127) // 128) * 128)
    return bn


def pretraining_loss(decoder_output, elem_idx, action_id, positive,
                     pos_bank, pos_mask, neg_bank, neg_mask,
                     margin=0.5, enforce_dissimilarity=False,
                     block_n=None, compute_dtype=jnp.bfloat16):
    """JAX wrapper reproducing PretrainingLossFn.forward semantics."""
    B, Q, D = decoder_output.shape
    L = elem_idx.shape[1]
    N = B * L
    A, K, _ = pos_bank.shape
    R = 2 * A * K
    R_pad = ((R + 7) // 8) * 8            # rubric rows live on sublanes -> pad to 8

    bn = _pick_block_n(N, D, R_pad, compute_dtype, block_n)
    N_pad = max(bn, ((N + bn - 1) // bn) * bn)
    grid = (N_pad // bn,)

    # ---- gather x1 = decoder_output[b][element_idx]; element axis lane-dense.
    #      gather -> cast -> transpose -> pad fuses on the XLA side.
    valid = elem_idx != -1                                       # (B, L)
    safe_idx = jnp.where(valid, elem_idx, 0)
    x = decoder_output[jnp.arange(B)[:, None], safe_idx].reshape(N, D).astype(jnp.float32)
    x_rnorm = jax.lax.rsqrt(jnp.maximum(jnp.sum(x * x, axis=-1), EPS * EPS))  # (N,) f32
    x_t = jnp.pad(x.T.astype(compute_dtype), ((0, 0), (0, N_pad - N)))        # (D, N_pad)

    # ---- pack both rubric banks ONCE; fold row mask and inverse norm into rows.
    row_mask = jnp.concatenate([pos_mask.reshape(A * K),
                                neg_mask.reshape(A * K)]).astype(jnp.float32)
    bank = jnp.concatenate([pos_bank.reshape(A * K, D),
                            neg_bank.reshape(A * K, D)], axis=0).astype(jnp.float32)
    row_norm = jnp.sqrt(jnp.sum(bank * bank, axis=-1))
    row_scale = jnp.where(row_mask > 0, 1.0 / jnp.maximum(row_norm, EPS), 0.0)
    bank = jnp.pad(bank * row_scale[:, None],
                   ((0, R_pad - R), (0, 0))).astype(compute_dtype)            # (R_pad, D)

    # Row codes (action*2 + polarity); sentinel for padded AND masked-out rows.
    rr = np.arange(R_pad)
    act_of_row = np.where(rr < A * K, rr // K, (rr - A * K) // K)
    pol_of_row = (rr >= A * K).astype(np.int64)
    base_code = np.where(rr < R, act_of_row * 2 + pol_of_row,
                         ROW_PAD_CODE).astype(np.float32)
    row_mask_p = jnp.pad(row_mask, (0, R_pad - R))
    row_code = jnp.where(row_mask_p > 0, jnp.asarray(base_code), ROW_PAD_CODE)
    row_code = row_code.astype(jnp.float32).reshape(R_pad, 1)

    # ---- per-element metadata packed into one (8, N_pad) f32 block.
    a = action_id.reshape(N).astype(jnp.int32)
    p = positive.reshape(N).astype(jnp.int32)
    vflat = valid.reshape(N)
    vf = vflat.astype(jnp.float32)
    # similarity target (+1) uses the same-polarity bank (pol = 1 - p);
    # dissimilarity target (-1) uses the opposite bank (pol = p).
    cnt_tab = jnp.stack([jnp.sum(pos_mask.astype(jnp.float32), axis=1),
                         jnp.sum(neg_mask.astype(jnp.float32), axis=1)],
                        axis=1).reshape(2 * A)                    # index by a*2+pol
    idx_sim = a * 2 + (1 - p)
    idx_dis = a * 2 + p
    # NOTE: if a selected bank has zero valid rows the clamp yields a 0
    # contribution while the element still counts (PyTorch never hits this).
    w_sim = vf / jnp.maximum(jnp.take(cnt_tab, idx_sim), 1.0)
    w_dis = vf / jnp.maximum(jnp.take(cnt_tab, idx_dis), 1.0)
    code_sim = jnp.where(vflat, idx_sim.astype(jnp.float32), ELEM_PAD_CODE)
    code_dis = jnp.where(vflat, idx_dis.astype(jnp.float32), ELEM_PAD_CODE)

    meta = jnp.full((8, N_pad), 0.0, jnp.float32)
    meta = meta.at[3, :].set(ELEM_PAD_CODE)
    meta = meta.at[4, :].set(ELEM_PAD_CODE)
    meta = meta.at[0, :N].set(x_rnorm)
    meta = meta.at[1, :N].set(w_sim)
    meta = meta.at[2, :N].set(w_dis)
    meta = meta.at[3, :N].set(code_sim)
    meta = meta.at[4, :N].set(code_dis)

    kernel = functools.partial(_pretraining_loss_kernel, float(margin),
                               bool(enforce_dissimilarity))

    sim_out, dis_out = pl.pallas_call(
        kernel,
        out_shape=(jax.ShapeDtypeStruct((1, N_pad), jnp.float32),
                   jax.ShapeDtypeStruct((1, N_pad), jnp.float32)),
        grid_spec=pltpu.PrefetchScalarGridSpec(
            num_scalar_prefetch=0,
            grid=grid,
            in_specs=[
                pl.BlockSpec((D, bn), lambda i: (0, i)),          # x^T, streamed
                pl.BlockSpec((8, bn), lambda i: (0, i)),          # per-element metadata
                pl.BlockSpec((R_pad, D), lambda i: (0, 0),        # bank: grid-invariant
                             pipeline_mode=pl.Buffered(1)),
                pl.BlockSpec((R_pad, 1), lambda i: (0, 0),        # row codes: grid-invariant
                             pipeline_mode=pl.Buffered(1)),
            ],
            out_specs=[
                pl.BlockSpec((1, bn), lambda i: (0, i)),          # lane-dense partials
                pl.BlockSpec((1, bn), lambda i: (0, i)),
            ],
        ),
        compiler_params=pltpu.CompilerParams(
            dimension_semantics=("parallel",),                    # disjoint output blocks
            vmem_limit_bytes=_vmem_limit_bytes()),
    )(x_t, meta, bank, row_code)

    # ---- trivial wrapper-side reduction / normalization.
    cnt = jnp.sum(vf)
    n = jnp.maximum(cnt, 1.0)       # PyTorch would NaN with zero labeled elements
    sum_sim = jnp.sum(sim_out)
    similarity_loss = sum_sim / n
    if enforce_dissimilarity:
        # PyTorch: norm_count (=2*N_valid) halved before normalization.
        sum_dis = jnp.sum(dis_out)
        dissimilarity_loss = sum_dis / n
        total = (sum_sim + sum_dis) / n
    else:
        dissimilarity_loss = jnp.float32(0.0)
        total = similarity_loss
    # TODO(synk): randomly_sample_dissim / hand_negatives / visual_text_triplet_loss
    # paths rely on Python-level random sampling / TextEncoder and are not implemented.
    losses = {"similarity_loss": similarity_loss,
              "dissimilarity_loss": dissimilarity_loss}
    return total, losses


def _reference_loss(decoder_output, labels, pos_dict, neg_dict, margin, enforce):
    """NumPy reference mirroring the PyTorch forward pass."""
    def cos(a, b):
        an = max(np.linalg.norm(a), 1e-8)
        bn = max(np.linalg.norm(b), 1e-8)
        return float(np.dot(a, b) / (an * bn))

    loss = 0.0
    norm_count = 0
    sim_total = 0.0
    dis_total = 0.0
    for b, elems in enumerate(labels):
        for idx, act, pos in elems:
            if idx == -1:
                continue
            x1 = np.asarray(decoder_output[b, idx])
            t1 = pos_dict[act] if pos else neg_dict[act]
            sim = float(np.mean([1.0 - cos(x1, row) for row in t1]))
            loss += sim
            sim_total += sim
            norm_count += 1
            if enforce:
                t2 = neg_dict[act] if pos else pos_dict[act]
                dis = float(np.mean([max(0.0, cos(x1, row) - margin) for row in t2]))
                loss += dis
                dis_total += dis
                norm_count += 1
    if enforce:
        norm_count //= 2
        dis_total /= norm_count
    sim_total /= norm_count
    return loss / norm_count, sim_total, dis_total


if __name__ == "__main__":
    key = jax.random.PRNGKey(0)
    B, Q, D, L, K = 2, 12, 128, 3, 4   # batch, num_queries, emb dim, labels/batch, rubric items
    margin = 0.5

    k1, k2, k3 = jax.random.split(key, 3)
    decoder_output = jax.random.normal(k1, (B, Q, D), dtype=jnp.float32)

    # Deterministic synthetic rubric-embedding banks (stand-in for TextEncoder).
    pos_counts = [4, 3, 4, 2]
    neg_counts = [3, 4, 2, 4]
    pos_bank = jax.random.normal(k2, (len(ACTIONS), K, D), dtype=jnp.float32)
    neg_bank = jax.random.normal(k3, (len(ACTIONS), K, D), dtype=jnp.float32)
    pos_mask = (jnp.arange(K)[None, :] < jnp.array(pos_counts)[:, None]).astype(jnp.float32)
    neg_mask = (jnp.arange(K)[None, :] < jnp.array(neg_counts)[:, None]).astype(jnp.float32)
    pos_bank = pos_bank * pos_mask[..., None]
    neg_bank = neg_bank * neg_mask[..., None]

    # label: per-batch list of (element_idx, action_cls, positive_label); -1 = skip.
    labels = [
        [(0, "jump", True), (5, "spin", False), (-1, "jump", True)],
        [(3, "ss", True), (7, "choreographic_ss", False), (11, "jump", True)],
    ]
    elem_idx = jnp.array([[e[0] for e in row] for row in labels], dtype=jnp.int32)
    action_id = jnp.array([[ACTION_TO_ID[e[1]] for e in row] for row in labels],
                          dtype=jnp.int32)
    positive = jnp.array([[1 if e[2] else 0 for e in row] for row in labels],
                         dtype=jnp.int32)

    # NumPy reference (mirrors the PyTorch forward).
    pos_np = np.asarray(pos_bank)
    neg_np = np.asarray(neg_bank)
    pos_dict = {a: pos_np[i, :pos_counts[i]] for i, a in enumerate(ACTIONS)}
    neg_dict = {a: neg_np[i, :neg_counts[i]] for i, a in enumerate(ACTIONS)}
    ref_total, ref_sim, ref_dis = _reference_loss(
        np.asarray(decoder_output), labels, pos_dict, neg_dict, margin, True)
    ref_total_nf, ref_sim_nf, _ = _reference_loss(
        np.asarray(decoder_output), labels, pos_dict, neg_dict, margin, False)

    common = (decoder_output, elem_idx, action_id, positive,
              pos_bank, pos_mask, neg_bank, neg_mask)

    # 1) Production path: bf16 MXU inputs, enforce_dissimilarity=True.
    total_bf, losses_bf = pretraining_loss(
        *common, margin=margin, enforce_dissimilarity=True,
        compute_dtype=jnp.bfloat16)
    total_bf = jax.block_until_ready(total_bf)
    np.testing.assert_allclose(float(total_bf), ref_total, rtol=5e-2, atol=2e-2)
    np.testing.assert_allclose(float(losses_bf["similarity_loss"]), ref_sim,
                               rtol=5e-2, atol=2e-2)
    np.testing.assert_allclose(float(losses_bf["dissimilarity_loss"]), ref_dis,
                               rtol=5e-2, atol=2e-2)

    # 2) f32 path: tighter check of the exact semantics (pre-normalized rows
    #    stay f32 here, per the review's correctness note).
    total_f32, losses_f32 = pretraining_loss(
        *common, margin=margin, enforce_dissimilarity=True,
        compute_dtype=jnp.float32)
    total_f32 = jax.block_until_ready(total_f32)
    np.testing.assert_allclose(float(total_f32), ref_total, rtol=5e-3, atol=5e-3)
    np.testing.assert_allclose(float(losses_f32["similarity_loss"]), ref_sim,
                               rtol=5e-3, atol=5e-3)
    np.testing.assert_allclose(float(losses_f32["dissimilarity_loss"]), ref_dis,
                               rtol=5e-3, atol=5e-3)

    # 3) enforce_dissimilarity=False path (trace-time-gated kernel).
    total_nf, losses_nf = pretraining_loss(
        *common, margin=margin, enforce_dissimilarity=False,
        compute_dtype=jnp.float32)
    total_nf = jax.block_until_ready(total_nf)
    np.testing.assert_allclose(float(total_nf), ref_total_nf, rtol=5e-3, atol=5e-3)
    np.testing.assert_allclose(float(losses_nf["similarity_loss"]), ref_sim_nf,
                               rtol=5e-3, atol=5e-3)
    np.testing.assert_allclose(float(losses_nf["dissimilarity_loss"]), 0.0, atol=1e-7)

    print("KERNEL_OK")
</pallas_src>

<mosaic_0001>
module attributes {stable_mosaic.version = 11 : i64} {
  func.func @_pretraining_loss_kernel(%arg0: i32, %arg1: memref<128x128xbf16, #tpu.memory_space<vmem>>, %arg2: memref<8x128xf32, #tpu.memory_space<vmem>>, %arg3: memref<32x128xbf16, #tpu.memory_space<vmem>>, %arg4: memref<32x1xf32, #tpu.memory_space<vmem>>, %arg5: memref<1x128xf32, #tpu.memory_space<vmem>>, %arg6: memref<1x128xf32, #tpu.memory_space<vmem>>) attributes {dimension_semantics = [#tpu.dimension_semantics<parallel>], iteration_bounds = array<i64: 1>, scalar_prefetch = 0 : i64, scratch_operands = 0 : i64, tpu.core_type = #tpu.core_type<tc>, window_params = [{transform_indices = @transform_0, window_bounds = array<i64: 128, 128>}, {transform_indices = @transform_1, window_bounds = array<i64: 8, 128>}, {pipeline_mode = #tpu.pipeline_mode<synchronous>, transform_indices = @transform_2, window_bounds = array<i64: 32, 128>}, {pipeline_mode = #tpu.pipeline_mode<synchronous>, transform_indices = @transform_3, window_bounds = array<i64: 32, 1>}, {transform_indices = @transform_4, window_bounds = array<i64: 1, 128>}, {transform_indices = @transform_5, window_bounds = array<i64: 1, 128>}]} {
    %c0 = arith.constant 0 : index
    %c0_0 = arith.constant 0 : index
    %0 = vector.load %arg3[%c0, %c0_0] : memref<32x128xbf16, #tpu.memory_space<vmem>>, vector<32x128xbf16>
    %c0_1 = arith.constant 0 : index
    %c0_2 = arith.constant 0 : index
    %1 = vector.load %arg1[%c0_1, %c0_2] : memref<128x128xbf16, #tpu.memory_space<vmem>>, vector<128x128xbf16>
    %cst = arith.constant dense<0.000000e+00> : vector<32x128xf32>
    %2 = tpu.matmul %0, %1, %cst {dimension_numbers = #tpu.dot_dimension_numbers<[1], [0], [0], [1], [0, 0, 1, 1], [], []>} : vector<32x128xbf16>, vector<128x128xbf16>, vector<32x128xf32> -> vector<32x128xf32>
    %c0_3 = arith.constant 0 : index
    %c0_4 = arith.constant 0 : index
    %3 = vector.load %arg2[%c0_3, %c0_4] : memref<8x128xf32, #tpu.memory_space<vmem>>, vector<8x128xf32>
    %4 = vector.extract_strided_slice %3 {offsets = [0, 0], sizes = [1, 128], strides = [1, 1]} : vector<8x128xf32> to vector<1x128xf32>
    %5 = vector.extract_strided_slice %3 {offsets = [1, 0], sizes = [1, 128], strides = [1, 1]} : vector<8x128xf32> to vector<1x128xf32>
    %6 = vector.extract_strided_slice %3 {offsets = [3, 0], sizes = [1, 128], strides = [1, 1]} : vector<8x128xf32> to vector<1x128xf32>
    %7 = vector.broadcast %4 : vector<1x128xf32> to vector<32x128xf32>
    %8 = arith.mulf %2, %7 : vector<32x128xf32>
    %c0_5 = arith.constant 0 : index
    %c0_6 = arith.constant 0 : index
    %9 = vector.load %arg4[%c0_5, %c0_6] : memref<32x1xf32, #tpu.memory_space<vmem>>, vector<32x1xf32>
    %10 = vector.broadcast %9 : vector<32x1xf32> to vector<32x128xf32>
    %11 = vector.broadcast %6 : vector<1x128xf32> to vector<32x128xf32>
    %12 = arith.cmpf oeq, %10, %11 : vector<32x128xf32>
    %13 = arith.extui %12 : vector<32x128xi1> to vector<32x128xi32>
    %14 = arith.sitofp %13 : vector<32x128xi32> to vector<32x128xf32>
    %cst_7 = arith.constant 1.000000e+00 : f32
    %15 = vector.broadcast %cst_7 : f32 to vector<32x128xf32>
    %16 = arith.subf %15, %8 : vector<32x128xf32>
    %17 = arith.mulf %14, %16 : vector<32x128xf32>
    %cst_8 = arith.constant dense<0.000000e+00> : vector<128xf32>
    %18 = vector.multi_reduction <add>, %17, %cst_8 [0] : vector<32x128xf32> to vector<128xf32>
    %19 = vector.shape_cast %18 : vector<128xf32> to vector<1x128xf32>
    %20 = arith.mulf %19, %5 : vector<1x128xf32>
    %c0_9 = arith.constant 0 : index
    %c0_10 = arith.constant 0 : index
    %21 = vector.load %arg5[%c0_9, %c0_10] : memref<1x128xf32, #tpu.memory_space<vmem>>, vector<1x128xf32>
    tpu.vector_store %arg5[%c0_9, %c0_10], %20 {strides = array<i32>} : memref<1x128xf32, #tpu.memory_space<vmem>>, vector<1x128xf32>,
    %22 = vector.extract_strided_slice %3 {offsets = [2, 0], sizes = [1, 128], strides = [1, 1]} : vector<8x128xf32> to vector<1x128xf32>
    %23 = vector.extract_strided_slice %3 {offsets = [4, 0], sizes = [1, 128], strides = [1, 1]} : vector<8x128xf32> to vector<1x128xf32>
    %24 = vector.broadcast %9 : vector<32x1xf32> to vector<32x128xf32>
    %25 = vector.broadcast %23 : vector<1x128xf32> to vector<32x128xf32>
    %26 = arith.cmpf oeq, %24, %25 : vector<32x128xf32>
    %27 = arith.extui %26 : vector<32x128xi1> to vector<32x128xi32>
    %28 = arith.sitofp %27 : vector<32x128xi32> to vector<32x128xf32>
    %cst_11 = arith.constant 5.000000e-01 : f32
    %29 = vector.broadcast %cst_11 : f32 to vector<32x128xf32>
    %30 = arith.subf %8, %29 : vector<32x128xf32>
    %cst_12 = arith.constant 0.000000e+00 : f32
    %31 = vector.broadcast %cst_12 : f32 to vector<32x128xf32>
    %32 = arith.maximumf %30, %31 : vector<32x128xf32>
    %33 = arith.mulf %28, %32 : vector<32x128xf32>
    %cst_13 = arith.constant dense<0.000000e+00> : vector<128xf32>
    %34 = vector.multi_reduction <add>, %33, %cst_13 [0] : vector<32x128xf32> to vector<128xf32>
    %35 = vector.shape_cast %34 : vector<128xf32> to vector<1x128xf32>
    %36 = arith.mulf %35, %22 : vector<1x128xf32>
    %c0_14 = arith.constant 0 : index
    %c0_15 = arith.constant 0 : index
    %37 = vector.load %arg6[%c0_14, %c0_15] : memref<1x128xf32, #tpu.memory_space<vmem>>, vector<1x128xf32>
    tpu.vector_store %arg6[%c0_14, %c0_15], %36 {strides = array<i32>} : memref<1x128xf32, #tpu.memory_space<vmem>>, vector<1x128xf32>,
    return
  }
  func.func @transform_0(%arg0: i32) -> (i32, i32) {
    %c0_i32 = arith.constant 0 : i32
    %c0_i32_0 = arith.constant 0 : i32
    return %c0_i32, %arg0 : i32, i32
  }
  func.func @transform_1(%arg0: i32) -> (i32, i32) {
    %c0_i32 = arith.constant 0 : i32
    %c0_i32_0 = arith.constant 0 : i32
    return %c0_i32, %arg0 : i32, i32
  }
  func.func @transform_2(%arg0: i32) -> (i32, i32) {
    %c0_i32 = arith.constant 0 : i32
    %c0_i32_0 = arith.constant 0 : i32
    %c0_i32_1 = arith.constant 0 : i32
    return %c0_i32, %c0_i32_0 : i32, i32
  }
  func.func @transform_3(%arg0: i32) -> (i32, i32) {
    %c0_i32 = arith.constant 0 : i32
    %c0_i32_0 = arith.constant 0 : i32
    %c0_i32_1 = arith.constant 0 : i32
    return %c0_i32, %c0_i32_0 : i32, i32
  }
  func.func @transform_4(%arg0: i32) -> (i32, i32) {
    %c0_i32 = arith.constant 0 : i32
    %c0_i32_0 = arith.constant 0 : i32
    return %c0_i32, %arg0 : i32, i32
  }
  func.func @transform_5(%arg0: i32) -> (i32, i32) {
    %c0_i32 = arith.constant 0 : i32
    %c0_i32_0 = arith.constant 0 : i32
    return %c0_i32, %arg0 : i32, i32
  }
}

</mosaic_0001>

<llo_original>
// kernel: tpu_custom_call.1
$region0: #{tpu_custom_call.1}
  #allocation0 [shape = 'u32[]', space=smem, size = 0x4, offset = 0x4, fixed_abs, tag = 'smem constant byte address 0x4 - core index']
  #allocation1 [shape = 'u32[144,128]{1,0:T(1,128)}', space=vmem, size = 0x12000, scoped, tag = 'internal scratch']
  %s0 = inlined_call_operand.hbm [shape: bf16[128,128], index: 0, kind: input, shape index: {}]
  %s1 = inlined_call_operand.vmem [shape: f32[8,128], index: 1, kind: input, shape index: {}]
  %s2 = inlined_call_operand.vmem [shape: bf16[32,128], index: 2, kind: input, shape index: {}]
  %s3 = inlined_call_operand.vmem [shape: f32[32,1], index: 3, kind: input, shape index: {}]
  %s4 = inlined_call_operand.hbm [shape: f32[1,128], index: 4, kind: output, shape index: {0}]
  %s5 = inlined_call_operand.hbm [shape: f32[1,128], index: 5, kind: output, shape index: {1}]
  %6 = xla_tuple %s4, %s5
  %s7 = sld [smem:[#allocation0]]
  $region38: #{tpu_custom_call.1} parent=0
    _
  %s9 = ssub.s32 1, %s7
  %s10 = scalar_select 0, %s9, %s7
  $region1: #{tpu_custom_call.1} parent=0
    #allocation2 [shape = 'u8[32768]{0}', space=vmem, size = 0x8000, scoped, tag = 'input window, operand 0, single buffered']
    #allocation3 [shape = 's32[1]{0}', space=sflag, size = 0x4, scoped, tag = 'scoped memory for tpu_custom_call.1']
    #allocation4 [shape = 's32[1]{0}', space=sflag, size = 0x4, scoped, tag = 'scoped memory for tpu_custom_call.1']
    #allocation5 [shape = 'u8[512]{0}', space=vmem, size = 0x400, scoped, tag = 'output window, operand 0, single buffered']
    #allocation6 [shape = 'u8[512]{0}', space=vmem, size = 0x400, scoped, tag = 'output window, operand 1, single buffered']
    #allocation7 [shape = 's32[1]{0}', space=sflag, size = 0x4, scoped, tag = 'scoped memory for tpu_custom_call.1']
    %11 = vsyncpa [#allocation3], 0
    %12 = vsyncpa [#allocation4], 0
    %13 = vsyncpa [#allocation7], 0
    // Predicated region
    $region2: #{tpu_custom_call.1} parent=1 // pred_check
      _
    $region3: #{tpu_custom_call.1} parent=1 // pred_check_branch
      %15 = sbr.rel (0) target = $region5
    $region4: #{tpu_custom_call.1} parent=1 // pred_region
      %s17 = ssub.s32 1024, 1024
      %18 = vsyncadd [#allocation3], %s17
      %s19 = sshll.u32 [#allocation2], 4
      %s20 = int_to_ptr.vmem [resolvable:$true] %s19
      %25 = dma.hbm_to_vmem [thread:$0]  %s0, 1024, %s20, [#allocation3], 64, 64, 4
    $region5: #{tpu_custom_call.1} parent=1 // pred_fallthru
      _
    // Predicated region
    $region6: #{tpu_custom_call.1} parent=1 // pred_check
      _
    $region7: #{tpu_custom_call.1} parent=1 // pred_check_branch
      %27 = sbr.rel (0) target = $region9
    $region8: #{tpu_custom_call.1} parent=1 // pred_region
      _
    $region9: #{tpu_custom_call.1} parent=1 // pred_fallthru
      _
    // Predicated region
    $region10: #{tpu_custom_call.1} parent=1 // pred_check
      _
    $region11: #{tpu_custom_call.1} parent=1 // pred_check_branch
      %29 = sbr.rel (0) target = $region13
    $region12: #{tpu_custom_call.1} parent=1 // pred_region
      _
    $region13: #{tpu_custom_call.1} parent=1 // pred_fallthru
      _
    // Predicated region
    $region14: #{tpu_custom_call.1} parent=1 // pred_check
      _
    $region15: #{tpu_custom_call.1} parent=1 // pred_check_branch
      %31 = sbr.rel (0) target = $region17
    $region16: #{tpu_custom_call.1} parent=1 // pred_region
      _
    $region17: #{tpu_custom_call.1} parent=1 // pred_fallthru
      _
    // Predicated region
    $region18: #{tpu_custom_call.1} parent=1 // pred_check
      _
    $region19: #{tpu_custom_call.1} parent=1 // pred_check_branch
      %33 = sbr.rel (0) target = $region21
    $region20: #{tpu_custom_call.1} parent=1 // pred_region
      %34 = dma.done [#allocation3], 1024
    $region21: #{tpu_custom_call.1} parent=1 // pred_fallthru
      _
    %v36 = vld [vmem:[%s2] sm:$0xf]
    %v37 = vld [vmem:[%s2 + $0x4] sm:$0xf]
    %v38 = vld [vmem:[%s2 + $0x8] sm:$0xf]
    %v39 = vld [vmem:[%s2 + $0xc] sm:$0xf]
    %v40 = vld [vmem:[#allocation2] sm:$0xf]
    %v41 = vld [vmem:[#allocation2 + $0x4] sm:$0xf]
    %v42 = vld [vmem:[#allocation2 + $0x8] sm:$0xf]
    %v43 = vld [vmem:[#allocation2 + $0xc] sm:$0xf]
    %v44 = vld [vmem:[#allocation2 + $0x10] sm:$0xf]
    %v45 = vld [vmem:[#allocation2 + $0x14] sm:$0xf]
    %v46 = vld [vmem:[#allocation2 + $0x18] sm:$0xf]
    %v47 = vld [vmem:[#allocation2 + $0x1c] sm:$0xf]
    %v48 = vld [vmem:[#allocation2 + $0x20] sm:$0xf]
    %v49 = vld [vmem:[#allocation2 + $0x24] sm:$0xf]
    %v50 = vld [vmem:[#allocation2 + $0x28] sm:$0xf]
    %v51 = vld [vmem:[#allocation2 + $0x2c] sm:$0xf]
    %v52 = vld [vmem:[#allocation2 + $0x30] sm:$0xf]
    %v53 = vld [vmem:[#allocation2 + $0x34] sm:$0xf]
    %v54 = vld [vmem:[#allocation2 + $0x38] sm:$0xf]
    %v55 = vld [vmem:[#allocation2 + $0x3c] sm:$0xf]
    %v60 = vunpack.c.l.b16 %v36
    %v61 = vunpack.c.l.b16 %v37
    %v62 = vunpack.c.l.b16 %v38
    %v63 = vunpack.c.l.b16 %v39
    %v64 = vpack.c.b16 %v61, %v60
    %v65 = vpack.c.b16 %v63, %v62
    %v84 = vunpack.c.l.b16 %v40
    %v85 = vunpack.c.l.b16 %v41
    %v86 = vunpack.c.l.b16 %v42
    %v87 = vunpack.c.l.b16 %v43
    %v88 = vunpack.c.l.b16 %v44
    %v89 = vunpack.c.l.b16 %v45
    %v90 = vunpack.c.l.b16 %v46
    %v91 = vunpack.c.l.b16 %v47
    %v92 = vunpack.c.l.b16 %v48
    %v93 = vunpack.c.l.b16 %v49
    %v94 = vunpack.c.l.b16 %v50
    %v95 = vunpack.c.l.b16 %v51
    %v96 = vunpack.c.l.b16 %v52
    %v97 = vunpack.c.l.b16 %v53
    %v98 = vunpack.c.l.b16 %v54
    %v99 = vunpack.c.l.b16 %v55
    %v100 = vpack.c.b16 %v85, %v84
    %v101 = vpack.c.b16 %v87, %v86
    %v102 = vpack.c.b16 %v89, %v88
    %v103 = vpack.c.b16 %v91, %v90
    %v104 = vpack.c.b16 %v93, %v92
    %v105 = vpack.c.b16 %v95, %v94
    %v106 = vpack.c.b16 %v97, %v96
    %v107 = vpack.c.b16 %v99, %v98
    %116 = vmatprep.subr.bf16.mxu0 0
    %117 = vmatpush1.bf16.msra.mxu0 %v107
    %118 = vmatprep.subr.bf16.mxu0 0
    %119 = vmatpush1.bf16.msra.mxu0 %v106
    %120 = vmatprep.subr.bf16.mxu0 0
    %121 = vmatpush1.bf16.msra.mxu0 %v105
    %122 = vmatprep.subr.bf16.mxu0 0
    %123 = vmatpush1.bf16.msra.mxu0 %v104
    %124 = vmatprep.subr.bf16.mxu0 0
    %125 = vmatpush1.bf16.msra.mxu0 %v103
    %126 = vmatprep.subr.bf16.mxu0 0
    %127 = vmatpush1.bf16.msra.mxu0 %v102
    %128 = vmatprep.subr.bf16.mxu0 0
    %129 = vmatpush1.bf16.msra.mxu0 %v101
    %130 = vmatprep.subr.bf16.mxu0 0
    %131 = vmatpush1.bf16.msra.mxu0 %v100
    %132 = vmatprep.subr.bf16.mxu0 0
    %133 = vmatpush2.bf16.msra.mxu0 0
    %134 = vmatprep.subr.bf16.mxu0 0
    %135 = vmatpush2.bf16.msra.mxu0 0
    %136 = vmatprep.subr.bf16.mxu0 0
    %137 = vmatpush2.bf16.msra.mxu0 0
    %138 = vmatprep.subr.bf16.mxu0 0
    %139 = vmatpush2.bf16.msra.mxu0 0
    %140 = vmatprep.subr.bf16.mxu0 0
    %141 = vmatpush2.bf16.msra.mxu0 0
    %142 = vmatprep.subr.bf16.mxu0 0
    %143 = vmatpush2.bf16.msra.mxu0 0
    %144 = vmatprep.subr.bf16.mxu0 0
    %145 = vmatpush2.bf16.msra.mxu0 0
    %146 = vmatprep.subr.bf16.mxu0 0
    %147 = vmatpush2.bf16.msra.mxu0 0
    %148 = vmatprep.mubr.bf16.mxu0 0
    %149 = vmatmul.mubr.bf16.gmra.mxu0 %v64
    %v150 = vpop.f32.mrf.mxu0
    %v151 = vadd.f32 0.0, %v150
    %v152 = vpop.f32.mrf.mxu0
    %v153 = vpop.f32.mrf.mxu0
    %v154 = vadd.f32 0.0, %v153
    %v155 = vpop.f32.mrf.mxu0
    %156 = vmatprep.mubr.bf16.mxu0 0
    %157 = vmatmul.mubr.bf16.gmra.mxu0 %v65
    %v158 = vpop.f32.mrf.mxu0
    %v159 = vadd.f32 0.0, %v158
    %v160 = vpop.f32.mrf.mxu0
    %v161 = vpop.f32.mrf.mxu0
    %v162 = vadd.f32 0.0, %v161
    %v163 = vpop.f32.mrf.mxu0
    %164 = vdwg.mxu0
    %v165 = vld [vmem:[%s1] sm:$0xff]
    %v166 = vlaneseq
    %v167 = vshrl.u32 %v166, 7
    %v168 = vsub.s32 0, %v167
    %v169 = vrot.slane %v165, %v168
    %v170 = vmul.f32 %v151, %v169
    %v171 = vmul.f32 %v154, %v169
    %v172 = vmul.f32 %v159, %v169
    %v173 = vmul.f32 %v162, %v169
    %v174 = vld [vmem:[%s3] sm:$0xff]
    %v175 = vld [vmem:[%s3 + $0x8] sm:$0xff]
    %v176 = vld [vmem:[%s3 + $0x10] sm:$0xff]
    %v177 = vld [vmem:[%s3 + $0x18] sm:$0xff]
    %179 = vset.pattern.permute.xlu0 0
    %180 = vperm.xlu0 %179, %v174
    %v181 = vpop.permute.xlu0 %180
    %184 = vset.pattern.permute.xlu0 0
    %185 = vperm.xlu0 %184, %v175
    %v186 = vpop.permute.xlu0 %185
    %189 = vset.pattern.permute.xlu0 0
    %190 = vperm.xlu0 %189, %v176
    %v191 = vpop.permute.xlu0 %190
    %194 = vset.pattern.permute.xlu0 0
    %195 = vperm.xlu0 %194, %v177
    %v196 = vpop.permute.xlu0 %195
    %v198 = vlaneseq
    %v199 = vshrl.u32 %v198, 7
    %v200 = vsub.s32 3, %v199
    %v201 = vrot.slane %v165, %v200
    %vm202 = vcmp.eq.f32.partialorder %v181, %v201
    %vm203 = vcmp.eq.f32.partialorder %v186, %v201
    %vm204 = vcmp.eq.f32.partialorder %v191, %v201
    %vm205 = vcmp.eq.f32.partialorder %v196, %v201
    %v206 = vsel %vm202, 1, 0
    %v207 = vsel %vm203, 1, 0
    %v208 = vsel %vm204, 1, 0
    %v209 = vsel %vm205, 1, 0
    %v210 = vcvt.s32.f32 %v206
    %v211 = vcvt.s32.f32 %v207
    %v212 = vcvt.s32.f32 %v208
    %v213 = vcvt.s32.f32 %v209
    %v214 = vsub.f32 1.0, %v170
    %v215 = vsub.f32 1.0, %v171
    %v216 = vsub.f32 1.0, %v172
    %v217 = vsub.f32 1.0, %v173
    %v218 = vmul.f32 %v210, %v214
    %v219 = vmul.f32 %v211, %v215
    %v220 = vmul.f32 %v212, %v216
    %v221 = vmul.f32 %v213, %v217
    %v222 = vadd.f32 %v218, %v219
    %v223 = vadd.f32 %v222, %v220
    %v224 = vadd.f32 %v223, %v221
    %v225 = vrot.slane %v224, 4
    %v226 = vadd.f32 %v224, %v225
    %v227 = vrot.slane %v226, 2
    %v228 = vadd.f32 %v226, %v227
    %v229 = vrot.slane %v228, 1
    %v230 = vadd.f32 %v228, %v229
    %v231 = vmul.f32 %v230, %v165
    %232 = vst [vmem:[#allocation5 - $0x1] sm:$0x2] %v231
    %v233 = vlaneseq
    %v234 = vshrl.u32 %v233, 7
    %v235 = vsub.s32 4, %v234
    %v236 = vrot.slane %v165, %v235
    %vm237 = vcmp.eq.f32.partialorder %v181, %v236
    %vm238 = vcmp.eq.f32.partialorder %v186, %v236
    %vm239 = vcmp.eq.f32.partialorder %v191, %v236
    %vm240 = vcmp.eq.f32.partialorder %v196, %v236
    %v241 = vsel %vm237, 1, 0
    %v242 = vsel %vm238, 1, 0
    %v243 = vsel %vm239, 1, 0
    %v244 = vsel %vm240, 1, 0
    %v245 = vcvt.s32.f32 %v241
    %v246 = vcvt.s32.f32 %v242
    %v247 = vcvt.s32.f32 %v243
    %v248 = vcvt.s32.f32 %v244
    %v249 = vsub.f32 %v170, 0.5
    %v250 = vsub.f32 %v171, 0.5
    %v251 = vsub.f32 %v172, 0.5
    %v252 = vsub.f32 %v173, 0.5
    %v253 = vmax.f32 %v249, 0.0
    %v254 = vmax.f32 %v250, 0.0
    %v255 = vmax.f32 %v251, 0.0
    %v256 = vmax.f32 %v252, 0.0
    %v257 = vmul.f32 %v245, %v253
    %v258 = vmul.f32 %v246, %v254
    %v259 = vmul.f32 %v247, %v255
    %v260 = vmul.f32 %v248, %v256
    %v261 = vadd.f32 %v257, %v258
    %v262 = vadd.f32 %v261, %v259
    %v263 = vadd.f32 %v262, %v260
    %v264 = vrot.slane %v263, 4
    %v265 = vadd.f32 %v263, %v264
    %v266 = vrot.slane %v265, 2
    %v267 = vadd.f32 %v265, %v266
    %v268 = vrot.slane %v267, 1
    %v269 = vadd.f32 %v267, %v268
    %v270 = vmul.f32 %v269, %v165
    %271 = vst [vmem:[#allocation6 - $0x2] sm:$0x4] %v270
    // Predicated region
    $region22: #{tpu_custom_call.1} parent=1 // pred_check
      _
    $region23: #{tpu_custom_call.1} parent=1 // pred_check_branch
      %273 = sbr.rel (0) target = $region25
    $region24: #{tpu_custom_call.1} parent=1 // pred_region
      %s275 = ssub.s32 16, 16
      %276 = vsyncadd [#allocation4], %s275
      %s278 = sshll.u32 [#allocation5], 4
      %s279 = int_to_ptr.vmem [resolvable:$true] %s278
      %281 = dma.vmem_to_hbm [thread:$0]  %s279, 16, %s4, [#allocation4]
    $region25: #{tpu_custom_call.1} parent=1 // pred_fallthru
      _
    // Predicated region
    $region26: #{tpu_custom_call.1} parent=1 // pred_check
      _
    $region27: #{tpu_custom_call.1} parent=1 // pred_check_branch
      %283 = sbr.rel (0) target = $region29
    $region28: #{tpu_custom_call.1} parent=1 // pred_region
      %s285 = ssub.s32 16, 16
      %286 = vsyncadd [#allocation7], %s285
      %s288 = sshll.u32 [#allocation6], 4
      %s289 = int_to_ptr.vmem [resolvable:$true] %s288
      %291 = dma.vmem_to_hbm [thread:$0]  %s289, 16, %s5, [#allocation7]
    $region29: #{tpu_custom_call.1} parent=1 // pred_fallthru
      _
    // Predicated region
    $region30: #{tpu_custom_call.1} parent=1 // pred_check
      _
    $region31: #{tpu_custom_call.1} parent=1 // pred_check_branch
      %293 = sbr.rel (0) target = $region33
    $region32: #{tpu_custom_call.1} parent=1 // pred_region
      %294 = dma.done [#allocation4], 16
    $region33: #{tpu_custom_call.1} parent=1 // pred_fallthru
      _
    // Predicated region
    $region34: #{tpu_custom_call.1} parent=1 // pred_check
      _
    $region35: #{tpu_custom_call.1} parent=1 // pred_check_branch
      %296 = sbr.rel (0) target = $region37
    $region36: #{tpu_custom_call.1} parent=1 // pred_region
      %297 = dma.done [#allocation7], 16
    $region37: #{tpu_custom_call.1} parent=1 // pred_fallthru
      _
    %298 = vsyncpa [#allocation3], 1
    %299 = vsyncpa [#allocation4], 1
    %300 = vsyncpa [#allocation7], 1

</llo_original>
